<compile_context>
chip_gen: v7x
topology: tpu7x:2x2x1
jax: 0.10.0
libtpu: 0.0.40
codegen_flags: <defaults>
</compile_context>

<pallas_src>
import jax
import jax.numpy as jnp
from jax.experimental import pallas as pl
from jax.experimental.pallas import tpu as pltpu


def _decoder_kernel(z_ref, w_ref, b_ref, out_ref):
    # out = sigmoid(z @ W + b); bf16 operands on the MXU, f32 accumulation.
    z = z_ref[...]                                     # (TB, latent) bf16
    w = w_ref[...]                                     # (latent, out_size) bf16
    acc = jnp.dot(z, w, preferred_element_type=jnp.float32)   # (TB, out_size) f32
    b = b_ref[...].astype(jnp.float32)                 # (1, out_size), single explicit broadcast
    y = acc + b
    # sigmoid(y) == 0.5 * (tanh(0.5*y) + 1): single EUP op, rest on the VPU.
    out = 0.5 * (jnp.tanh(0.5 * y) + 1.0)
    out_ref[...] = out.astype(out_ref.dtype)


def _round_up(n, m):
    return ((n + m - 1) // m) * m


def _vmem_budget_bytes(tb, latent, out_size):
    z_tiles = 2 * tb * latent * 2          # double-buffered bf16 z tiles
    o_tiles = 2 * tb * out_size * 4        # double-buffered f32 out tiles
    weights = latent * out_size * 2 + out_size * 4   # resident W (bf16) + bias (f32)
    return z_tiles + o_tiles + weights


def vanilla_decoder(z, w, b, *, block_b=512):
    """z: (B, latent_size); w: (latent_size, out_size) (transposed nn.Linear weight);
       b: (1, out_size)  ->  (B, out_size) in z.dtype."""
    B, latent = z.shape
    out_size = w.shape[1]
    out_dtype = z.dtype

    # bf16 operands for the MXU; accumulation / bias / sigmoid stay f32 in-kernel.
    z_bf16 = z.astype(jnp.bfloat16)
    w_bf16 = w.astype(jnp.bfloat16)
    b_f32 = b.astype(jnp.float32)

    # Batch tile: multiple of 16 (bf16 sublane packing), capped by block_b and by
    # a VMEM budget that also fits v7x's smaller (64 MiB) VMEM.
    vmem_cap = 64 * 1024 * 1024
    tb = min(block_b, _round_up(max(B, 1), 16))
    tb = _round_up(tb, 16)
    while tb > 16 and _vmem_budget_bytes(tb, latent, out_size) > vmem_cap // 2:
        tb = max(16, _round_up(tb // 2, 16))

    b_pad = _round_up(B, tb)
    if b_pad != B:
        z_bf16 = jnp.pad(z_bf16, ((0, b_pad - B), (0, 0)))

    vmem_limit = min(vmem_cap, max(32 * 1024 * 1024,
                                   int(1.5 * _vmem_budget_bytes(tb, latent, out_size))))

    out = pl.pallas_call(
        _decoder_kernel,
        out_shape=jax.ShapeDtypeStruct((b_pad, out_size), out_dtype),
        grid_spec=pltpu.PrefetchScalarGridSpec(
            num_scalar_prefetch=0,
            grid=(pl.cdiv(b_pad, tb),),
            in_specs=[
                pl.BlockSpec((tb, latent), lambda i: (i, 0)),        # z: batch-tiled
                pl.BlockSpec((latent, out_size), lambda i: (0, 0)),  # W: resident
                pl.BlockSpec((1, out_size), lambda i: (0, 0)),       # b: resident
            ],
            out_specs=pl.BlockSpec((tb, out_size), lambda i: (i, 0)),
        ),
        compiler_params=pltpu.CompilerParams(
            dimension_semantics=("parallel",),   # v7x: shard batch tiles across 2 TCs
            vmem_limit_bytes=vmem_limit,
        ),
    )(z_bf16, w_bf16, b_f32)

    return out[:B] if b_pad != B else out


def init_params(key, latent_size, out_size, dtype=jnp.float32):
    """Mimic nn.Linear(latent_size, out_size) uniform(-1/sqrt(fan_in), 1/sqrt(fan_in)) init.
       Weight stored transposed as (latent_size, out_size)."""
    kw, kb = jax.random.split(key)
    bound = 1.0 / (latent_size ** 0.5)
    w = jax.random.uniform(kw, (latent_size, out_size), dtype, -bound, bound)
    b = jax.random.uniform(kb, (1, out_size), dtype, -bound, bound)
    return w, b


def reference(z, w, b):
    return jax.nn.sigmoid(z @ w + b)


if __name__ == "__main__":
    B, latent_size, out_size = 8, 128, 256

    key = jax.random.PRNGKey(0)
    kz, kp = jax.random.split(key)
    z = jax.random.normal(kz, (B, latent_size), jnp.float32)
    w, b = init_params(kp, latent_size, out_size)

    out = vanilla_decoder(z, w, b)
    out = jax.block_until_ready(out)

    ref = reference(z, w, b)
    assert out.shape == (B, out_size)
    # bf16 matmul operands -> relaxed tolerance vs f32 reference.
    assert jnp.allclose(out, ref, atol=2e-2, rtol=2e-2), "mismatch vs JAX reference"

    print("KERNEL_OK")
</pallas_src>

<mosaic_0001>
module attributes {stable_mosaic.version = 11 : i64} {
  func.func @_decoder_kernel(%arg0: i32, %arg1: memref<16x128xbf16, #tpu.memory_space<vmem>>, %arg2: memref<128x256xbf16, #tpu.memory_space<vmem>>, %arg3: memref<1x256xf32, #tpu.memory_space<vmem>>, %arg4: memref<16x256xf32, #tpu.memory_space<vmem>>) attributes {dimension_semantics = [#tpu.dimension_semantics<parallel>], iteration_bounds = array<i64: 1>, scalar_prefetch = 0 : i64, scratch_operands = 0 : i64, tpu.core_type = #tpu.core_type<tc>, window_params = [{transform_indices = @transform_0, window_bounds = array<i64: 16, 128>}, {pipeline_mode = #tpu.pipeline_mode<synchronous>, transform_indices = @transform_1, window_bounds = array<i64: 128, 256>}, {pipeline_mode = #tpu.pipeline_mode<synchronous>, transform_indices = @transform_2, window_bounds = array<i64: 1, 256>}, {transform_indices = @transform_3, window_bounds = array<i64: 16, 256>}]} {
    %c0 = arith.constant 0 : index
    %c0_0 = arith.constant 0 : index
    %0 = vector.load %arg1[%c0, %c0_0] : memref<16x128xbf16, #tpu.memory_space<vmem>>, vector<16x128xbf16>
    %c0_1 = arith.constant 0 : index
    %c0_2 = arith.constant 0 : index
    %1 = vector.load %arg2[%c0_1, %c0_2] : memref<128x256xbf16, #tpu.memory_space<vmem>>, vector<128x256xbf16>
    %cst = arith.constant dense<0.000000e+00> : vector<16x256xf32>
    %2 = tpu.matmul %0, %1, %cst {dimension_numbers = #tpu.dot_dimension_numbers<[1], [0], [0], [1], [0, 0, 1, 1], [], []>} : vector<16x128xbf16>, vector<128x256xbf16>, vector<16x256xf32> -> vector<16x256xf32>
    %c0_3 = arith.constant 0 : index
    %c0_4 = arith.constant 0 : index
    %3 = vector.load %arg3[%c0_3, %c0_4] : memref<1x256xf32, #tpu.memory_space<vmem>>, vector<1x256xf32>
    %4 = vector.broadcast %3 : vector<1x256xf32> to vector<16x256xf32>
    %5 = arith.addf %2, %4 : vector<16x256xf32>
    %cst_5 = arith.constant 5.000000e-01 : f32
    %6 = vector.broadcast %cst_5 : f32 to vector<16x256xf32>
    %7 = arith.mulf %6, %5 : vector<16x256xf32>
    %8 = math.tanh %7 : vector<16x256xf32>
    %cst_6 = arith.constant 1.000000e+00 : f32
    %9 = vector.broadcast %cst_6 : f32 to vector<16x256xf32>
    %10 = arith.addf %8, %9 : vector<16x256xf32>
    %cst_7 = arith.constant 5.000000e-01 : f32
    %11 = vector.broadcast %cst_7 : f32 to vector<16x256xf32>
    %12 = arith.mulf %11, %10 : vector<16x256xf32>
    %c0_8 = arith.constant 0 : index
    %c0_9 = arith.constant 0 : index
    %13 = vector.load %arg4[%c0_8, %c0_9] : memref<16x256xf32, #tpu.memory_space<vmem>>, vector<16x256xf32>
    tpu.vector_store %arg4[%c0_8, %c0_9], %12 {strides = array<i32>} : memref<16x256xf32, #tpu.memory_space<vmem>>, vector<16x256xf32>,
    return
  }
  func.func @transform_0(%arg0: i32) -> (i32, i32) {
    %c0_i32 = arith.constant 0 : i32
    %c0_i32_0 = arith.constant 0 : i32
    return %arg0, %c0_i32 : i32, i32
  }
  func.func @transform_1(%arg0: i32) -> (i32, i32) {
    %c0_i32 = arith.constant 0 : i32
    %c0_i32_0 = arith.constant 0 : i32
    %c0_i32_1 = arith.constant 0 : i32
    return %c0_i32, %c0_i32_0 : i32, i32
  }
  func.func @transform_2(%arg0: i32) -> (i32, i32) {
    %c0_i32 = arith.constant 0 : i32
    %c0_i32_0 = arith.constant 0 : i32
    %c0_i32_1 = arith.constant 0 : i32
    return %c0_i32, %c0_i32_0 : i32, i32
  }
  func.func @transform_3(%arg0: i32) -> (i32, i32) {
    %c0_i32 = arith.constant 0 : i32
    %c0_i32_0 = arith.constant 0 : i32
    return %arg0, %c0_i32 : i32, i32
  }
}

</mosaic_0001>

<llo_original>
// kernel: tpu_custom_call.1
$region0: #{tpu_custom_call.1}
  #allocation0 [shape = 'u32[]', space=smem, size = 0x4, offset = 0x4, fixed_abs, tag = 'smem constant byte address 0x4 - core index']
  #allocation1 [shape = 'u32[144,128]{1,0:T(1,128)}', space=vmem, size = 0x12000, scoped, tag = 'internal scratch']
  %s0 = inlined_call_operand.hbm [shape: bf16[16,128], index: 0, kind: input, shape index: {}]
  %s1 = inlined_call_operand.hbm [shape: bf16[128,256], index: 1, kind: input, shape index: {}]
  %s2 = inlined_call_operand.vmem [shape: f32[1,256], index: 2, kind: input, shape index: {}]
  %s3 = inlined_call_operand.hbm [shape: f32[16,256], index: 3, kind: output, shape index: {}]
  %s4 = sld [smem:[#allocation0]]
  $region30: #{tpu_custom_call.1} parent=0
    _
  %s6 = ssub.s32 1, %s4
  %s7 = scalar_select 0, %s6, %s4
  $region1: #{tpu_custom_call.1} parent=0
    #allocation2 [shape = 'u8[4096]{0}', space=vmem, size = 0x1000, scoped, tag = 'input window, operand 0, single buffered']
    #allocation3 [shape = 's32[1]{0}', space=sflag, size = 0x4, scoped, tag = 'scoped memory for tpu_custom_call.1']
    #allocation4 [shape = 's32[1]{0}', space=sflag, size = 0x4, scoped, tag = 'scoped memory for tpu_custom_call.1']
    #allocation5 [shape = 'u8[65536]{0}', space=vmem, size = 0x10000, scoped, tag = 'input window, operand 1, single buffered']
    #allocation6 [shape = 's32[1]{0}', space=sflag, size = 0x4, scoped, tag = 'scoped memory for tpu_custom_call.1']
    #allocation7 [shape = 'u8[16384]{0}', space=vmem, size = 0x4000, scoped, tag = 'output window, operand 0, single buffered']
    %8 = vsyncpa [#allocation3], 0
    %9 = vsyncpa [#allocation6], 0
    %10 = vsyncpa [#allocation4], 0
    // Predicated region
    $region2: #{tpu_custom_call.1} parent=1 // pred_check
      _
    $region3: #{tpu_custom_call.1} parent=1 // pred_check_branch
      %12 = sbr.rel (0) target = $region5
    $region4: #{tpu_custom_call.1} parent=1 // pred_region
      %s14 = ssub.s32 128, 128
      %15 = vsyncadd [#allocation3], %s14
      %s16 = sshll.u32 [#allocation2], 4
      %s17 = int_to_ptr.vmem [resolvable:$true] %s16
      %22 = dma.hbm_to_vmem [thread:$0]  %s0, 128, %s17, [#allocation3], 64, 64, 4
    $region5: #{tpu_custom_call.1} parent=1 // pred_fallthru
      _
    // Predicated region
    $region6: #{tpu_custom_call.1} parent=1 // pred_check
      _
    $region7: #{tpu_custom_call.1} parent=1 // pred_check_branch
      %24 = sbr.rel (0) target = $region9
    $region8: #{tpu_custom_call.1} parent=1 // pred_region
      %s26 = ssub.s32 2048, 2048
      %27 = vsyncadd [#allocation6], %s26
      %s28 = sshll.u32 [#allocation5], 4
      %s29 = int_to_ptr.vmem [resolvable:$true] %s28
      %34 = dma.hbm_to_vmem [thread:$0]  %s1, 2048, %s29, [#allocation6], 128, 128, 8
    $region9: #{tpu_custom_call.1} parent=1 // pred_fallthru
      _
    // Predicated region
    $region10: #{tpu_custom_call.1} parent=1 // pred_check
      _
    $region11: #{tpu_custom_call.1} parent=1 // pred_check_branch
      %36 = sbr.rel (0) target = $region13
    $region12: #{tpu_custom_call.1} parent=1 // pred_region
      _
    $region13: #{tpu_custom_call.1} parent=1 // pred_fallthru
      _
    // Predicated region
    $region14: #{tpu_custom_call.1} parent=1 // pred_check
      _
    $region15: #{tpu_custom_call.1} parent=1 // pred_check_branch
      %38 = sbr.rel (0) target = $region17
    $region16: #{tpu_custom_call.1} parent=1 // pred_region
      %39 = dma.done [#allocation3], 128
    $region17: #{tpu_custom_call.1} parent=1 // pred_fallthru
      _
    // Predicated region
    $region18: #{tpu_custom_call.1} parent=1 // pred_check
      _
    $region19: #{tpu_custom_call.1} parent=1 // pred_check_branch
      %41 = sbr.rel (0) target = $region21
    $region20: #{tpu_custom_call.1} parent=1 // pred_region
      %42 = dma.done [#allocation6], 2048
    $region21: #{tpu_custom_call.1} parent=1 // pred_fallthru
      _
    %v44 = vld [vmem:[#allocation2] sm:$0xf]
    %v45 = vld [vmem:[#allocation2 + $0x4] sm:$0xf]
    %v46 = vld [vmem:[#allocation5] sm:$0xff]
    %v47 = vld [vmem:[#allocation5 + $0x8] sm:$0xff]
    %v48 = vld [vmem:[#allocation5 + $0x10] sm:$0xff]
    %v49 = vld [vmem:[#allocation5 + $0x18] sm:$0xff]
    %v50 = vld [vmem:[#allocation5 + $0x20] sm:$0xff]
    %v51 = vld [vmem:[#allocation5 + $0x28] sm:$0xff]
    %v52 = vld [vmem:[#allocation5 + $0x30] sm:$0xff]
    %v53 = vld [vmem:[#allocation5 + $0x38] sm:$0xff]
    %v54 = vld [vmem:[#allocation5 + $0x40] sm:$0xff]
    %v55 = vld [vmem:[#allocation5 + $0x48] sm:$0xff]
    %v56 = vld [vmem:[#allocation5 + $0x50] sm:$0xff]
    %v57 = vld [vmem:[#allocation5 + $0x58] sm:$0xff]
    %v58 = vld [vmem:[#allocation5 + $0x60] sm:$0xff]
    %v59 = vld [vmem:[#allocation5 + $0x68] sm:$0xff]
    %v60 = vld [vmem:[#allocation5 + $0x70] sm:$0xff]
    %v61 = vld [vmem:[#allocation5 + $0x78] sm:$0xff]
    %v62 = vld [vmem:[%s2] sm:$0x3]
    %v64 = vlaneseq
    %v65 = vshrl.u32 %v64, 7
    %v66 = vsub.s32 0, %v65
    %v67 = vrot.slane %v62, %v66
    %v68 = vlaneseq
    %v69 = vshrl.u32 %v68, 7
    %v70 = vsub.s32 1, %v69
    %v71 = vrot.slane %v62, %v70
    %v76 = vunpack.c.l.b16 %v44
    %v77 = vunpack.c.l.b16 %v45
    %v78 = vpack.c.b16 %v77, %v76
    %v96 = vunpack.c.l.b16 %v46
    %v97 = vunpack.c.h.b16 %v46
    %v98 = vunpack.c.l.b16 %v47
    %v99 = vunpack.c.h.b16 %v47
    %v100 = vunpack.c.l.b16 %v48
    %v101 = vunpack.c.h.b16 %v48
    %v102 = vunpack.c.l.b16 %v49
    %v103 = vunpack.c.h.b16 %v49
    %v104 = vunpack.c.l.b16 %v50
    %v105 = vunpack.c.h.b16 %v50
    %v106 = vunpack.c.l.b16 %v51
    %v107 = vunpack.c.h.b16 %v51
    %v108 = vunpack.c.l.b16 %v52
    %v109 = vunpack.c.h.b16 %v52
    %v110 = vunpack.c.l.b16 %v53
    %v111 = vunpack.c.h.b16 %v53
    %v112 = vunpack.c.l.b16 %v54
    %v113 = vunpack.c.h.b16 %v54
    %v114 = vunpack.c.l.b16 %v55
    %v115 = vunpack.c.h.b16 %v55
    %v116 = vunpack.c.l.b16 %v56
    %v117 = vunpack.c.h.b16 %v56
    %v118 = vunpack.c.l.b16 %v57
    %v119 = vunpack.c.h.b16 %v57
    %v120 = vunpack.c.l.b16 %v58
    %v121 = vunpack.c.h.b16 %v58
    %v122 = vunpack.c.l.b16 %v59
    %v123 = vunpack.c.h.b16 %v59
    %v124 = vunpack.c.l.b16 %v60
    %v125 = vunpack.c.h.b16 %v60
    %v126 = vunpack.c.l.b16 %v61
    %v127 = vunpack.c.h.b16 %v61
    %v128 = vpack.c.b16 %v98, %v96
    %v129 = vpack.c.b16 %v99, %v97
    %v130 = vpack.c.b16 %v102, %v100
    %v131 = vpack.c.b16 %v103, %v101
    %v132 = vpack.c.b16 %v106, %v104
    %v133 = vpack.c.b16 %v107, %v105
    %v134 = vpack.c.b16 %v110, %v108
    %v135 = vpack.c.b16 %v111, %v109
    %v136 = vpack.c.b16 %v114, %v112
    %v137 = vpack.c.b16 %v115, %v113
    %v138 = vpack.c.b16 %v118, %v116
    %v139 = vpack.c.b16 %v119, %v117
    %v140 = vpack.c.b16 %v122, %v120
    %v141 = vpack.c.b16 %v123, %v121
    %v142 = vpack.c.b16 %v126, %v124
    %v143 = vpack.c.b16 %v127, %v125
    %160 = vmatprep.subr.bf16.mxu0 %v129
    %161 = vmatpush1.bf16.msra.mxu0 %v128
    %162 = vmatprep.subr.bf16.mxu0 %v131
    %163 = vmatpush1.bf16.msra.mxu0 %v130
    %164 = vmatprep.subr.bf16.mxu0 %v133
    %165 = vmatpush1.bf16.msra.mxu0 %v132
    %166 = vmatprep.subr.bf16.mxu0 %v135
    %167 = vmatpush1.bf16.msra.mxu0 %v134
    %168 = vmatprep.subr.bf16.mxu0 %v137
    %169 = vmatpush1.bf16.msra.mxu0 %v136
    %170 = vmatprep.subr.bf16.mxu0 %v139
    %171 = vmatpush1.bf16.msra.mxu0 %v138
    %172 = vmatprep.subr.bf16.mxu0 %v141
    %173 = vmatpush1.bf16.msra.mxu0 %v140
    %174 = vmatprep.subr.bf16.mxu0 %v143
    %175 = vmatpush1.bf16.msra.mxu0 %v142
    %176 = vmatprep.subr.bf16.mxu0 0
    %177 = vmatpush1.bf16.msra.mxu0 0
    %178 = vmatprep.subr.bf16.mxu0 0
    %179 = vmatpush1.bf16.msra.mxu0 0
    %180 = vmatprep.subr.bf16.mxu0 0
    %181 = vmatpush1.bf16.msra.mxu0 0
    %182 = vmatprep.subr.bf16.mxu0 0
    %183 = vmatpush1.bf16.msra.mxu0 0
    %184 = vmatprep.subr.bf16.mxu0 0
    %185 = vmatpush1.bf16.msra.mxu0 0
    %186 = vmatprep.subr.bf16.mxu0 0
    %187 = vmatpush1.bf16.msra.mxu0 0
    %188 = vmatprep.subr.bf16.mxu0 0
    %189 = vmatpush1.bf16.msra.mxu0 0
    %190 = vmatprep.subr.bf16.mxu0 0
    %191 = vmatpush1.bf16.msra.mxu0 0
    %192 = vmatprep.mubr.bf16.mxu0 0
    %193 = vmatmul.mubr.bf16.gmra.mrb[0].mxu0 %v78
    %v194 = vpop.f32.mrb[0].mxu0
    %v195 = vadd.f32 %v67, %v194
    %v196 = vpop.f32.mrb[0].mxu0
    %v197 = vadd.f32 %v71, %v196
    %v198 = vpop.f32.mrb[0].mxu0
    %v199 = vadd.f32 %v67, %v198
    %v200 = vpop.f32.mrb[0].mxu0
    %v201 = vadd.f32 %v71, %v200
    %202 = vdwg.mxu0
    %v203 = vmul.f32 %v195, 0.5
    %v204 = vmul.f32 %v197, 0.5
    %v205 = vmul.f32 %v199, 0.5
    %v206 = vmul.f32 %v201, 0.5
    %v207 = vtanh.pop %v203
    %v208 = vtanh.pop %v204
    %v209 = vtanh.pop %v205
    %v210 = vtanh.pop %v206
    %v211 = vadd.f32 %v207, 1.0
    %v212 = vadd.f32 %v208, 1.0
    %v213 = vadd.f32 %v209, 1.0
    %v214 = vadd.f32 %v210, 1.0
    %v215 = vmul.f32 %v211, 0.5
    %v216 = vmul.f32 %v212, 0.5
    %v217 = vmul.f32 %v213, 0.5
    %v218 = vmul.f32 %v214, 0.5
    %219 = vst [vmem:[#allocation7] sm:$0xff] %v215
    %220 = vst [vmem:[#allocation7 + $0x8] sm:$0xff] %v216
    %221 = vst [vmem:[#allocation7 + $0x10] sm:$0xff] %v217
    %222 = vst [vmem:[#allocation7 + $0x18] sm:$0xff] %v218
    // Predicated region
    $region22: #{tpu_custom_call.1} parent=1 // pred_check
      _
    $region23: #{tpu_custom_call.1} parent=1 // pred_check_branch
      %224 = sbr.rel (0) target = $region25
    $region24: #{tpu_custom_call.1} parent=1 // pred_region
      %s226 = ssub.s32 512, 512
      %227 = vsyncadd [#allocation4], %s226
      %s228 = sshll.u32 [#allocation7], 4
      %s229 = int_to_ptr.vmem [resolvable:$true] %s228
      %234 = dma.vmem_to_hbm [thread:$0]  %s229, 512, %s3, [#allocation4], 256, 256, 16
    $region25: #{tpu_custom_call.1} parent=1 // pred_fallthru
      _
    // Predicated region
    $region26: #{tpu_custom_call.1} parent=1 // pred_check
      _
    $region27: #{tpu_custom_call.1} parent=1 // pred_check_branch
      %236 = sbr.rel (0) target = $region29
    $region28: #{tpu_custom_call.1} parent=1 // pred_region
      %237 = dma.done [#allocation4], 512
    $region29: #{tpu_custom_call.1} parent=1 // pred_fallthru
      _
    %238 = vsyncpa [#allocation3], 1
    %239 = vsyncpa [#allocation6], 1
    %240 = vsyncpa [#allocation4], 1

</llo_original>
